<compile_context>
chip_gen: v7x
topology: tpu7x:2x2x1
jax: 0.10.0
libtpu: 0.0.40
codegen_flags: <defaults>
</compile_context>

<pallas_src>
import jax
import jax.numpy as jnp
import numpy as np
from jax.experimental import pallas as pl
from jax.experimental.pallas import tpu as pltpu


def _skff_kernel(*refs):
    # refs = (inp_0, ..., inp_{height-1}, wdu_t, wfc_flat, out)
    # inp_h   : [bb, C, HW]       one branch, `bb` batch elements
    # wdu_t   : [C, d]            conv_du 1x1 weight, transposed (no bias)
    # wfc_flat: [height*C, d]     fcs[i] 1x1 weights, stacked+flattened (no bias)
    # out     : [bb, C, HW]
    *inp_refs, wdu_t_ref, wfc_ref, out_ref = refs
    height = len(inp_refs)
    C = out_ref.shape[1]
    hw = out_ref.shape[2]

    # Global average pool of the branch-sum, via per-branch lane reductions
    # (XLU) instead of materializing feats_U.
    s = jnp.sum(inp_refs[0][...].astype(jnp.float32), axis=-1, keepdims=True)
    for h in range(1, height):
        s = s + jnp.sum(inp_refs[h][...].astype(jnp.float32), axis=-1, keepdims=True)
    feats_S = s * (1.0 / hw)                                     # [bb, C, 1]

    # conv_du (1x1, no bias) + LeakyReLU(0.2), on the VPU:
    #   z[b, j] = sum_c w_du[j, c] * S[b, c]
    z = jnp.sum(wdu_t_ref[...][None, :, :] * feats_S, axis=1, keepdims=True)  # [bb, 1, d]
    z = jnp.where(z >= 0.0, z, 0.2 * z)

    # All per-branch 1x1 fc logits fused in one broadcast-mul + lane reduce:
    #   logits[b, h*C + c] = sum_j w_fcs[h, c, j] * z[b, j]
    logits_all = jnp.sum(wfc_ref[...][None, :, :] * z, axis=-1, keepdims=True)  # [bb, height*C, 1]
    logits = [logits_all[:, h * C:(h + 1) * C, :] for h in range(height)]       # each [bb, C, 1]

    # Softmax over the branch dimension (max-subtracted).
    m = logits[0]
    for h in range(1, height):
        m = jnp.maximum(m, logits[h])
    exps = [jnp.exp(l - m) for l in logits]
    denom = exps[0]
    for h in range(1, height):
        denom = denom + exps[h]
    inv = pl.reciprocal(denom, approx=False)                     # [bb, C, 1]

    # feats_V = sum_h attn_h * inp_h
    acc = inp_refs[0][...].astype(jnp.float32) * (exps[0] * inv)
    for h in range(1, height):
        acc = acc + inp_refs[h][...].astype(jnp.float32) * (exps[h] * inv)
    out_ref[...] = acc.astype(out_ref.dtype)


def _choose_batch_block(B, per_batch_bytes):
    """Fold batch grid steps on single-TC chips; keep >=2 parallel steps on v7x+."""
    try:
        kind = jax.devices()[0].device_kind.lower()
    except Exception:
        kind = ""
    single_tc = any(t in kind for t in ("v2", "v3", "v4", "v5", "v6"))
    if not single_tc:
        # v7x+: 2 TensorCores shard "parallel" grid axes -> keep >=2 steps.
        return 1
    bb = 1
    # Single-TC: merge steps while staying well inside scoped VMEM.
    while bb < B and B % (bb * 2) == 0 and (2 * bb) * per_batch_bytes <= (4 << 20):
        bb *= 2
    return bb


def skff_forward(inp_feats, w_du, w_fcs):
    """inp_feats: list of `height` arrays, each NCHW [B, C, H, W]."""
    height = len(inp_feats)
    B, C, H, W = inp_feats[0].shape
    HW = H * W
    d = w_du.shape[0]
    dtype = inp_feats[0].dtype

    # Layout-trivial reshapes (no transpose, no stacked copy).
    branches = [x.reshape(B, C, HW) for x in inp_feats]
    wdu_t = jnp.transpose(w_du)                    # [C, d]
    wfc_flat = w_fcs.reshape(height * C, d)        # [height*C, d]

    per_batch_bytes = (height + 1) * C * HW * jnp.dtype(dtype).itemsize
    bb = _choose_batch_block(B, per_batch_bytes)
    grid = (B // bb,)

    branch_spec = pl.BlockSpec((bb, C, HW), lambda b: (b, 0, 0))
    in_specs = [branch_spec] * height + [
        pl.BlockSpec((C, d), lambda b: (0, 0)),
        pl.BlockSpec((height * C, d), lambda b: (0, 0)),
    ]

    out = pl.pallas_call(
        _skff_kernel,
        out_shape=jax.ShapeDtypeStruct((B, C, HW), dtype),
        grid_spec=pltpu.PrefetchScalarGridSpec(
            num_scalar_prefetch=0,
            grid=grid,
            in_specs=in_specs,
            out_specs=pl.BlockSpec((bb, C, HW), lambda b: (b, 0, 0)),
        ),
        compiler_params=pltpu.CompilerParams(
            dimension_semantics=("parallel",),
        ),
    )(*branches, wdu_t, wfc_flat)
    return out.reshape(B, C, H, W)


def skff_reference(inp_feats, w_du, w_fcs):
    """Plain-JAX reference matching the PyTorch forward semantics."""
    x = jnp.stack(inp_feats, axis=1)                   # [B, height, C, H, W]
    U = jnp.sum(x, axis=1)                             # [B, C, H, W]
    S = jnp.mean(U, axis=(2, 3))                       # [B, C]
    Z = jnp.einsum("dc,bc->bd", w_du, S)
    Z = jnp.where(Z >= 0.0, Z, 0.2 * Z)                # LeakyReLU(0.2)
    logits = jnp.einsum("hcd,bd->bhc", w_fcs, Z)       # [B, height, C]
    attn = jax.nn.softmax(logits, axis=1)              # softmax over height
    return jnp.sum(x * attn[:, :, :, None, None], axis=1)


if __name__ == "__main__":
    # Module config: in_channels=16, height=3, reduction=8 -> d = max(16//8, 4) = 4
    B, C, H, W = 2, 16, 16, 16
    height, reduction = 3, 8
    d = max(C // reduction, 4)

    key = jax.random.PRNGKey(0)
    k_in, k_du, k_fc = jax.random.split(key, 3)

    # Deterministic synthetic inputs (the `height` branch feature maps).
    inp_feats = [
        jax.random.normal(jax.random.fold_in(k_in, i), (B, C, H, W), jnp.float32)
        for i in range(height)
    ]

    # Deterministic synthetic parameters (bias=False in the module).
    w_du = 0.1 * jax.random.normal(k_du, (d, C), jnp.float32)           # conv_du weight
    w_fcs = 0.1 * jax.random.normal(k_fc, (height, C, d), jnp.float32)  # fcs weights

    out = skff_forward(inp_feats, w_du, w_fcs)
    jax.block_until_ready(out)

    ref = skff_reference(inp_feats, w_du, w_fcs)
    np.testing.assert_allclose(np.asarray(out), np.asarray(ref), rtol=1e-4, atol=1e-5)

    print("KERNEL_OK")
</pallas_src>

<mosaic_0001>
module attributes {stable_mosaic.version = 11 : i64} {
  func.func @_skff_kernel(%arg0: i32, %arg1: memref<1x16x256xf32, #tpu.memory_space<vmem>>, %arg2: memref<1x16x256xf32, #tpu.memory_space<vmem>>, %arg3: memref<1x16x256xf32, #tpu.memory_space<vmem>>, %arg4: memref<16x4xf32, #tpu.memory_space<vmem>>, %arg5: memref<48x4xf32, #tpu.memory_space<vmem>>, %arg6: memref<1x16x256xf32, #tpu.memory_space<vmem>>) attributes {dimension_semantics = [#tpu.dimension_semantics<parallel>], iteration_bounds = array<i64: 2>, scalar_prefetch = 0 : i64, scratch_operands = 0 : i64, tpu.core_type = #tpu.core_type<tc>, window_params = [{transform_indices = @transform_0, window_bounds = array<i64: 1, 16, 256>}, {transform_indices = @transform_1, window_bounds = array<i64: 1, 16, 256>}, {transform_indices = @transform_2, window_bounds = array<i64: 1, 16, 256>}, {pipeline_mode = #tpu.pipeline_mode<synchronous>, transform_indices = @transform_3, window_bounds = array<i64: 16, 4>}, {pipeline_mode = #tpu.pipeline_mode<synchronous>, transform_indices = @transform_4, window_bounds = array<i64: 48, 4>}, {transform_indices = @transform_5, window_bounds = array<i64: 1, 16, 256>}]} {
    %c0 = arith.constant 0 : index
    %c0_0 = arith.constant 0 : index
    %c0_1 = arith.constant 0 : index
    %0 = vector.load %arg1[%c0, %c0_0, %c0_1] : memref<1x16x256xf32, #tpu.memory_space<vmem>>, vector<1x16x256xf32>
    %cst = arith.constant dense<0.000000e+00> : vector<1x16xf32>
    %1 = vector.multi_reduction <add>, %0, %cst [2] : vector<1x16x256xf32> to vector<1x16xf32>
    %2 = vector.shape_cast %1 : vector<1x16xf32> to vector<1x16x1xf32>
    %c0_2 = arith.constant 0 : index
    %c0_3 = arith.constant 0 : index
    %c0_4 = arith.constant 0 : index
    %3 = vector.load %arg2[%c0_2, %c0_3, %c0_4] : memref<1x16x256xf32, #tpu.memory_space<vmem>>, vector<1x16x256xf32>
    %cst_5 = arith.constant dense<0.000000e+00> : vector<1x16xf32>
    %4 = vector.multi_reduction <add>, %3, %cst_5 [2] : vector<1x16x256xf32> to vector<1x16xf32>
    %5 = vector.shape_cast %4 : vector<1x16xf32> to vector<1x16x1xf32>
    %6 = arith.addf %2, %5 : vector<1x16x1xf32>
    %c0_6 = arith.constant 0 : index
    %c0_7 = arith.constant 0 : index
    %c0_8 = arith.constant 0 : index
    %7 = vector.load %arg3[%c0_6, %c0_7, %c0_8] : memref<1x16x256xf32, #tpu.memory_space<vmem>>, vector<1x16x256xf32>
    %cst_9 = arith.constant dense<0.000000e+00> : vector<1x16xf32>
    %8 = vector.multi_reduction <add>, %7, %cst_9 [2] : vector<1x16x256xf32> to vector<1x16xf32>
    %9 = vector.shape_cast %8 : vector<1x16xf32> to vector<1x16x1xf32>
    %10 = arith.addf %6, %9 : vector<1x16x1xf32>
    %cst_10 = arith.constant 3.906250e-03 : f32
    %11 = vector.broadcast %cst_10 : f32 to vector<1x16x1xf32>
    %12 = arith.mulf %10, %11 : vector<1x16x1xf32>
    %c0_11 = arith.constant 0 : index
    %c0_12 = arith.constant 0 : index
    %13 = vector.load %arg4[%c0_11, %c0_12] : memref<16x4xf32, #tpu.memory_space<vmem>>, vector<16x4xf32>
    %14 = vector.shape_cast %13 : vector<16x4xf32> to vector<1x16x4xf32>
    %15 = vector.broadcast %12 : vector<1x16x1xf32> to vector<1x16x4xf32>
    %16 = arith.mulf %14, %15 : vector<1x16x4xf32>
    %cst_13 = arith.constant dense<0.000000e+00> : vector<1x4xf32>
    %17 = vector.multi_reduction <add>, %16, %cst_13 [1] : vector<1x16x4xf32> to vector<1x4xf32>
    %18 = vector.shape_cast %17 : vector<1x4xf32> to vector<1x1x4xf32>
    %cst_14 = arith.constant 0.000000e+00 : f32
    %19 = vector.broadcast %cst_14 : f32 to vector<1x1x4xf32>
    %20 = arith.cmpf oge, %18, %19 : vector<1x1x4xf32>
    %cst_15 = arith.constant 2.000000e-01 : f32
    %21 = vector.broadcast %cst_15 : f32 to vector<1x1x4xf32>
    %22 = arith.mulf %21, %18 : vector<1x1x4xf32>
    %23 = arith.select %20, %18, %22 : vector<1x1x4xi1>, vector<1x1x4xf32>
    %c0_16 = arith.constant 0 : index
    %c0_17 = arith.constant 0 : index
    %24 = vector.load %arg5[%c0_16, %c0_17] : memref<48x4xf32, #tpu.memory_space<vmem>>, vector<48x4xf32>
    %25 = vector.shape_cast %24 : vector<48x4xf32> to vector<1x48x4xf32>
    %26 = vector.broadcast %23 : vector<1x1x4xf32> to vector<1x48x4xf32>
    %27 = arith.mulf %25, %26 : vector<1x48x4xf32>
    %cst_18 = arith.constant dense<0.000000e+00> : vector<1x48xf32>
    %28 = vector.multi_reduction <add>, %27, %cst_18 [2] : vector<1x48x4xf32> to vector<1x48xf32>
    %29 = vector.shape_cast %28 : vector<1x48xf32> to vector<1x48x1xf32>
    %30 = vector.extract_strided_slice %29 {offsets = [0, 0, 0], sizes = [1, 16, 1], strides = [1, 1, 1]} : vector<1x48x1xf32> to vector<1x16x1xf32>
    %31 = vector.extract_strided_slice %29 {offsets = [0, 16, 0], sizes = [1, 16, 1], strides = [1, 1, 1]} : vector<1x48x1xf32> to vector<1x16x1xf32>
    %32 = vector.extract_strided_slice %29 {offsets = [0, 32, 0], sizes = [1, 16, 1], strides = [1, 1, 1]} : vector<1x48x1xf32> to vector<1x16x1xf32>
    %33 = arith.maximumf %30, %31 : vector<1x16x1xf32>
    %34 = arith.maximumf %33, %32 : vector<1x16x1xf32>
    %35 = arith.subf %30, %34 : vector<1x16x1xf32>
    %36 = math.exp %35 : vector<1x16x1xf32>
    %37 = arith.subf %31, %34 : vector<1x16x1xf32>
    %38 = math.exp %37 : vector<1x16x1xf32>
    %39 = arith.subf %32, %34 : vector<1x16x1xf32>
    %40 = math.exp %39 : vector<1x16x1xf32>
    %41 = arith.addf %36, %38 : vector<1x16x1xf32>
    %42 = arith.addf %41, %40 : vector<1x16x1xf32>
    %43 = tpu.reciprocal %42 : vector<1x16x1xf32> -> vector<1x16x1xf32>
    %c0_19 = arith.constant 0 : index
    %c0_20 = arith.constant 0 : index
    %c0_21 = arith.constant 0 : index
    %44 = vector.load %arg1[%c0_19, %c0_20, %c0_21] : memref<1x16x256xf32, #tpu.memory_space<vmem>>, vector<1x16x256xf32>
    %45 = arith.mulf %36, %43 : vector<1x16x1xf32>
    %46 = vector.broadcast %45 : vector<1x16x1xf32> to vector<1x16x256xf32>
    %47 = arith.mulf %44, %46 : vector<1x16x256xf32>
    %c0_22 = arith.constant 0 : index
    %c0_23 = arith.constant 0 : index
    %c0_24 = arith.constant 0 : index
    %48 = vector.load %arg2[%c0_22, %c0_23, %c0_24] : memref<1x16x256xf32, #tpu.memory_space<vmem>>, vector<1x16x256xf32>
    %49 = arith.mulf %38, %43 : vector<1x16x1xf32>
    %50 = vector.broadcast %49 : vector<1x16x1xf32> to vector<1x16x256xf32>
    %51 = arith.mulf %48, %50 : vector<1x16x256xf32>
    %52 = arith.addf %47, %51 : vector<1x16x256xf32>
    %c0_25 = arith.constant 0 : index
    %c0_26 = arith.constant 0 : index
    %c0_27 = arith.constant 0 : index
    %53 = vector.load %arg3[%c0_25, %c0_26, %c0_27] : memref<1x16x256xf32, #tpu.memory_space<vmem>>, vector<1x16x256xf32>
    %54 = arith.mulf %40, %43 : vector<1x16x1xf32>
    %55 = vector.broadcast %54 : vector<1x16x1xf32> to vector<1x16x256xf32>
    %56 = arith.mulf %53, %55 : vector<1x16x256xf32>
    %57 = arith.addf %52, %56 : vector<1x16x256xf32>
    %c0_28 = arith.constant 0 : index
    %c0_29 = arith.constant 0 : index
    %c0_30 = arith.constant 0 : index
    %58 = vector.load %arg6[%c0_28, %c0_29, %c0_30] : memref<1x16x256xf32, #tpu.memory_space<vmem>>, vector<1x16x256xf32>
    tpu.vector_store %arg6[%c0_28, %c0_29, %c0_30], %57 {strides = array<i32>} : memref<1x16x256xf32, #tpu.memory_space<vmem>>, vector<1x16x256xf32>,
    return
  }
  func.func @transform_0(%arg0: i32) -> (i32, i32, i32) {
    %c0_i32 = arith.constant 0 : i32
    %c0_i32_0 = arith.constant 0 : i32
    %c0_i32_1 = arith.constant 0 : i32
    return %arg0, %c0_i32, %c0_i32_0 : i32, i32, i32
  }
  func.func @transform_1(%arg0: i32) -> (i32, i32, i32) {
    %c0_i32 = arith.constant 0 : i32
    %c0_i32_0 = arith.constant 0 : i32
    %c0_i32_1 = arith.constant 0 : i32
    return %arg0, %c0_i32, %c0_i32_0 : i32, i32, i32
  }
  func.func @transform_2(%arg0: i32) -> (i32, i32, i32) {
    %c0_i32 = arith.constant 0 : i32
    %c0_i32_0 = arith.constant 0 : i32
    %c0_i32_1 = arith.constant 0 : i32
    return %arg0, %c0_i32, %c0_i32_0 : i32, i32, i32
  }
  func.func @transform_3(%arg0: i32) -> (i32, i32) {
    %c0_i32 = arith.constant 0 : i32
    %c0_i32_0 = arith.constant 0 : i32
    %c0_i32_1 = arith.constant 0 : i32
    return %c0_i32, %c0_i32_0 : i32, i32
  }
  func.func @transform_4(%arg0: i32) -> (i32, i32) {
    %c0_i32 = arith.constant 0 : i32
    %c0_i32_0 = arith.constant 0 : i32
    %c0_i32_1 = arith.constant 0 : i32
    return %c0_i32, %c0_i32_0 : i32, i32
  }
  func.func @transform_5(%arg0: i32) -> (i32, i32, i32) {
    %c0_i32 = arith.constant 0 : i32
    %c0_i32_0 = arith.constant 0 : i32
    %c0_i32_1 = arith.constant 0 : i32
    return %arg0, %c0_i32, %c0_i32_0 : i32, i32, i32
  }
}

</mosaic_0001>

<llo_original>
// kernel: tpu_custom_call.1
$region0: #{tpu_custom_call.1}
  #allocation0 [shape = 'u32[]', space=smem, size = 0x4, offset = 0x4, fixed_abs, tag = 'smem constant byte address 0x4 - core index']
  #allocation1 [shape = 'u32[144,128]{1,0:T(1,128)}', space=vmem, size = 0x12000, scoped, tag = 'internal scratch']
  %s0 = inlined_call_operand.vmem [shape: f32[2,16,256], index: 0, kind: input, shape index: {}]
  %s1 = inlined_call_operand.hbm [shape: f32[2,16,256], index: 1, kind: input, shape index: {}]
  %s2 = inlined_call_operand.hbm [shape: f32[2,16,256], index: 2, kind: input, shape index: {}]
  %s3 = inlined_call_operand.vmem [shape: f32[16,4], index: 3, kind: input, shape index: {}]
  %s4 = inlined_call_operand.vmem [shape: f32[48,4], index: 4, kind: input, shape index: {}]
  %s5 = inlined_call_operand.hbm [shape: f32[2,16,256], index: 5, kind: output, shape index: {}]
  %s6 = sld [smem:[#allocation0]]
  $region61: #{tpu_custom_call.1} parent=0
    _
  %s8 = ssub.s32 1, %s6
  %s9 = scalar_select 0, %s8, %s6
  $region1: #{tpu_custom_call.1} parent=0
    #allocation2 [shape = 'u8[32768]{0}', space=vmem, size = 0x8000, scoped, tag = 'input window, operand 1']
    #allocation3 [shape = 's32[2]{0}', space=sflag, size = 0x8, scoped, tag = 'scoped memory for tpu_custom_call.1']
    #allocation4 [shape = 's32[2]{0}', space=sflag, size = 0x8, scoped, tag = 'scoped memory for tpu_custom_call.1']
    #allocation5 [shape = 'u8[32768]{0}', space=vmem, size = 0x8000, scoped, tag = 'input window, operand 2']
    #allocation6 [shape = 's32[2]{0}', space=sflag, size = 0x8, scoped, tag = 'scoped memory for tpu_custom_call.1']
    #allocation7 [shape = 'u8[32768]{0}', space=vmem, size = 0x8000, scoped, tag = 'output window, operand 0']
    %10 = vsyncpa [#allocation3], 0
    %s11 = scalar_lea.sflag [#allocation3], 1
    %12 = vsyncpa %s11, 0
    %13 = vsyncpa [#allocation6], 0
    %s14 = scalar_lea.sflag [#allocation6], 1
    %15 = vsyncpa %s14, 0
    %16 = vsyncpa [#allocation4], 0
    %s17 = scalar_lea.sflag [#allocation4], 1
    %18 = vsyncpa %s17, 0
    loop: start=0, step=1, limit=4
    $region2: #{tpu_custom_call.1} parent=1 // loop_pre_header
      _
    $region3: #{tpu_custom_call.1} parent=1 // loop_header
      %s20 = sphi 0, %s24
      %p21 = scmp.ge.s32.totalorder %s20, 4
      %s30 = sphi 0, %s32
      %s33 = sphi 0, %s30
      %s34 = sphi 0, %s33
      %s50 = sphi 0, %s34
      %s56 = sphi 0, %s58
      %s59 = sphi 0, %s56
      %s60 = sphi 0, %s59
      %s76 = sphi 0, %s60
      %s82 = sphi 0, %s84
      %s85 = sphi 0, %s82
      %s86 = sphi 0, %s85
      %s102 = sphi 0, %s86
      %s106 = sphi 0, %s106
      %s108 = sphi 0, %s106
      %s109 = sphi 0, %s108
      %s123 = sphi 0, %s109
      %s127 = sphi 0, %s127
      %s129 = sphi 0, %s127
      %s130 = sphi 0, %s129
      %s144 = sphi 0, %s130
      %s150 = sphi 0, %s152
      %s153 = sphi 0, %s150
      %s154 = sphi 0, %s153
      %s170 = sphi 0, %s154
    $region4: #{tpu_custom_call.1} parent=1 // loop_header_branch
      %23 = sbr.rel (%p21) target = $region8
    $region5: #{tpu_custom_call.1} parent=1 // loop_body
      %s25 = ssub.s32 %s20, 1
      %s26 = ssub.s32 %s20, 2
      %s27 = sadd.s32 %s20, 1
      %s28 = ssub.s32 %s20, %s27
      %p29 = scmp.eq.s32.totalorder %s28, 0
      %s31 = sadd.s32 %s30, 1
      %s32 = scalar_select %p29, %s30, %s31
      %p35 = pneg %p29
      %p36 = scmp.eq.s32.totalorder %s20, 1
      %p37 = por %p35, %p36
      %p38 = scmp.ne.s32.totalorder %s30, %s33
      %p39 = scmp.eq.s32.totalorder %s20, 0
      %p40 = por %p38, %p39
      %p41 = scmp.ne.s32.totalorder %s30, %s33
      %p42 = scmp.eq.s32.totalorder %s25, 1
      %p43 = por %p41, %p42
      %p44 = scmp.ne.s32.totalorder %s33, %s34
      %p45 = scmp.eq.s32.totalorder %s25, 0
      %p46 = por %p44, %p45
      %p47 = scmp.ne.s32.totalorder %s33, %s34
      %p48 = scmp.eq.s32.totalorder %s26, 1
      %p49 = por %p47, %p48
      %p51 = scmp.ne.s32.totalorder %s34, %s50
      %p52 = scmp.eq.s32.totalorder %s26, 0
      %p53 = por %p51, %p52
      %s54 = ssub.s32 %s20, %s27
      %p55 = scmp.eq.s32.totalorder %s54, 0
      %s57 = sadd.s32 %s56, 1
      %s58 = scalar_select %p55, %s56, %s57
      %p61 = pneg %p55
      %p62 = scmp.eq.s32.totalorder %s20, 1
      %p63 = por %p61, %p62
      %p64 = scmp.ne.s32.totalorder %s56, %s59
      %p65 = scmp.eq.s32.totalorder %s20, 0
      %p66 = por %p64, %p65
      %p67 = scmp.ne.s32.totalorder %s56, %s59
      %p68 = scmp.eq.s32.totalorder %s25, 1
      %p69 = por %p67, %p68
      %p70 = scmp.ne.s32.totalorder %s59, %s60
      %p71 = scmp.eq.s32.totalorder %s25, 0
      %p72 = por %p70, %p71
      %p73 = scmp.ne.s32.totalorder %s59, %s60
      %p74 = scmp.eq.s32.totalorder %s26, 1
      %p75 = por %p73, %p74
      %p77 = scmp.ne.s32.totalorder %s60, %s76
      %p78 = scmp.eq.s32.totalorder %s26, 0
      %p79 = por %p77, %p78
      %s80 = ssub.s32 %s20, %s27
      %p81 = scmp.eq.s32.totalorder %s80, 0
      %s83 = sadd.s32 %s82, 1
      %s84 = scalar_select %p81, %s82, %s83
      %p87 = pneg %p81
      %p88 = scmp.eq.s32.totalorder %s20, 1
      %p89 = por %p87, %p88
      %p90 = scmp.ne.s32.totalorder %s82, %s85
      %p91 = scmp.eq.s32.totalorder %s20, 0
      %p92 = por %p90, %p91
      %p93 = scmp.ne.s32.totalorder %s82, %s85
      %p94 = scmp.eq.s32.totalorder %s25, 1
      %p95 = por %p93, %p94
      %p96 = scmp.ne.s32.totalorder %s85, %s86
      %p97 = scmp.eq.s32.totalorder %s25, 0
      %p98 = por %p96, %p97
      %p99 = scmp.ne.s32.totalorder %s85, %s86
      %p100 = scmp.eq.s32.totalorder %s26, 1
      %p101 = por %p99, %p100
      %p103 = scmp.ne.s32.totalorder %s86, %s102
      %p104 = scmp.eq.s32.totalorder %s26, 0
      %p105 = por %p103, %p104
      %s107 = sadd.s32 %s106, 1
      %p110 = scmp.eq.s32.totalorder %s20, 1
      %p111 = scmp.ne.s32.totalorder %s106, %s108
      %p112 = scmp.eq.s32.totalorder %s20, 0
      %p113 = por %p111, %p112
      %p114 = scmp.ne.s32.totalorder %s106, %s108
      %p115 = scmp.eq.s32.totalorder %s25, 1
      %p116 = por %p114, %p115
      %p117 = scmp.ne.s32.totalorder %s108, %s109
      %p118 = scmp.eq.s32.totalorder %s25, 0
      %p119 = por %p117, %p118
      %p120 = scmp.ne.s32.totalorder %s108, %s109
      %p121 = scmp.eq.s32.totalorder %s26, 1
      %p122 = por %p120, %p121
      %p124 = scmp.ne.s32.totalorder %s109, %s123
      %p125 = scmp.eq.s32.totalorder %s26, 0
      %p126 = por %p124, %p125
      %s128 = sadd.s32 %s127, 1
      %p131 = scmp.eq.s32.totalorder %s20, 1
      %p132 = scmp.ne.s32.totalorder %s127, %s129
      %p133 = scmp.eq.s32.totalorder %s20, 0
      %p134 = por %p132, %p133
      %p135 = scmp.ne.s32.totalorder %s127, %s129
      %p136 = scmp.eq.s32.totalorder %s25, 1
      %p137 = por %p135, %p136
      %p138 = scmp.ne.s32.totalorder %s129, %s130
      %p139 = scmp.eq.s32.totalorder %s25, 0
      %p140 = por %p138, %p139
      %p141 = scmp.ne.s32.totalorder %s129, %s130
      %p142 = scmp.eq.s32.totalorder %s26, 1
      %p143 = por %p141, %p142
      %p145 = scmp.ne.s32.totalorder %s130, %s144
      %p146 = scmp.eq.s32.totalorder %s26, 0
      %p147 = por %p145, %p146
      %s148 = ssub.s32 %s20, %s27
      %p149 = scmp.eq.s32.totalorder %s148, 0
      %s151 = sadd.s32 %s150, 1
      %s152 = scalar_select %p149, %s150, %s151
      %p155 = pneg %p149
      %p156 = scmp.eq.s32.totalorder %s20, 1
      %p157 = por %p155, %p156
      %p158 = scmp.ne.s32.totalorder %s150, %s153
      %p159 = scmp.eq.s32.totalorder %s20, 0
      %p160 = por %p158, %p159
      %p161 = scmp.ne.s32.totalorder %s150, %s153
      %p162 = scmp.eq.s32.totalorder %s25, 1
      %p163 = por %p161, %p162
      %p164 = scmp.ne.s32.totalorder %s153, %s154
      %p165 = scmp.eq.s32.totalorder %s25, 0
      %p166 = por %p164, %p165
      %p167 = scmp.ne.s32.totalorder %s153, %s154
      %p168 = scmp.eq.s32.totalorder %s26, 1
      %p169 = por %p167, %p168
      %p171 = scmp.ne.s32.totalorder %s154, %s170
      %p172 = scmp.eq.s32.totalorder %s26, 0
      %p173 = por %p171, %p172
      %p174 = scmp.le.s32.totalorder 1, %s20
      %p175 = scmp.lt.s32.totalorder %s20, 3
      %p176 = pnand %p174, %p175
      %p177 = pneg %p176
      // Predicated region
      $region9: #{tpu_custom_call.1} parent=5 // pred_check
        _
      $region10: #{tpu_custom_call.1} parent=5 // pred_check_branch
        %179 = sbr.rel (%p176) target = $region12
      $region11: #{tpu_custom_call.1} parent=5 // pred_region
        %s180 = ssub.s32 %s20, 1
        // Predicated region
        $region13: #{tpu_custom_call.1} parent=11 // pred_check
          %p181 = pneg %p119
        $region14: #{tpu_custom_call.1} parent=11 // pred_check_branch
          %183 = sbr.rel (%p181) target = $region16
        $region15: #{tpu_custom_call.1} parent=11 // pred_region
          _
        $region16: #{tpu_custom_call.1} parent=11 // pred_fallthru
          _
        // Predicated region
        $region17: #{tpu_custom_call.1} parent=11 // pred_check
          %p184 = pneg %p140
        $region18: #{tpu_custom_call.1} parent=11 // pred_check_branch
          %186 = sbr.rel (%p184) target = $region20
        $region19: #{tpu_custom_call.1} parent=11 // pred_region
          _
        $region20: #{tpu_custom_call.1} parent=11 // pred_fallthru
          _
      $region12: #{tpu_custom_call.1} parent=5 // pred_fallthru
        _
      %p187 = scmp.lt.s32.totalorder %s20, 2
      // Predicated region
      $region21: #{tpu_custom_call.1} parent=5 // pred_check
        %p188 = pneg %p187
      $region22: #{tpu_custom_call.1} parent=5 // pred_check_branch
        %190 = sbr.rel (%p188) target = $region24
      $region23: #{tpu_custom_call.1} parent=5 // pred_region
        // Predicated region
        $region25: #{tpu_custom_call.1} parent=23 // pred_check
          %p191 = pneg %p40
        $region26: #{tpu_custom_call.1} parent=23 // pred_check_branch
          %193 = sbr.rel (%p191) target = $region28
        $region27: #{tpu_custom_call.1} parent=23 // pred_region
          %p194 = scmp.lt.s32.totalorder %s20, 1
          %s195 = scalar_select %p194, %s20, 1
          %s196 = smul.addr %s195, 4
          %s197 = smul.addr %s196, 8
          %s198 = scalar_lea.vmem %s0, %s197
        $region28: #{tpu_custom_call.1} parent=23 // pred_fallthru
          _
        // Predicated region
        $region29: #{tpu_custom_call.1} parent=23 // pred_check
          %p199 = pneg %p66
        $region30: #{tpu_custom_call.1} parent=23 // pred_check_branch
          %201 = sbr.rel (%p199) target = $region32
        $region31: #{tpu_custom_call.1} parent=23 // pred_region
          %s202 = sand.u32 %s56, 1
          %s203 = scalar_lea.sflag [#allocation3], %s202
          %s204 = sand.u32 %s56, 1
          %s205 = smul.addr %s204, 32
          %s206 = scalar_lea.vmem [#allocation2], %s205
          %s208 = ssub.s32 512, 512
          %209 = vsyncadd %s203, %s208
          %s210 = smul.addr %s20, 4
          %s211 = smul.addr %s210, 128
          %s212 = scalar_lea.hbm %s1, %s211
          %s213 = sshll.u32 %s206, 4
          %s214 = int_to_ptr.vmem [resolvable:$true] %s213
          %219 = dma.hbm_to_vmem [thread:$0]  %s212, 512, %s214, %s203, 256, 256, 16
        $region32: #{tpu_custom_call.1} parent=23 // pred_fallthru
          _
        // Predicated region
        $region33: #{tpu_custom_call.1} parent=23 // pred_check
          %p220 = pneg %p92
        $region34: #{tpu_custom_call.1} parent=23 // pred_check_branch
          %222 = sbr.rel (%p220) target = $region36
        $region35: #{tpu_custom_call.1} parent=23 // pred_region
          %s223 = sand.u32 %s82, 1
          %s224 = scalar_lea.sflag [#allocation6], %s223
          %s225 = sand.u32 %s82, 1
          %s226 = smul.addr %s225, 32
          %s227 = scalar_lea.vmem [#allocation5], %s226
          %s229 = ssub.s32 512, 512
          %230 = vsyncadd %s224, %s229
          %s231 = smul.addr %s20, 4
          %s232 = smul.addr %s231, 128
          %s233 = scalar_lea.hbm %s2, %s232
          %s234 = sshll.u32 %s227, 4
          %s235 = int_to_ptr.vmem [resolvable:$true] %s234
          %240 = dma.hbm_to_vmem [thread:$0]  %s233, 512, %s235, %s224, 256, 256, 16
        $region36: #{tpu_custom_call.1} parent=23 // pred_fallthru
          _
      $region24: #{tpu_custom_call.1} parent=5 // pred_fallthru
        _
      %p241 = scmp.le.s32.totalorder 1, %s20
      %p242 = scmp.lt.s32.totalorder %s20, 3
      %p243 = pnand %p241, %p242
      %p244 = pneg %p243
      // Predicated region
      $region37: #{tpu_custom_call.1} parent=5 // pred_check
        _
      $region38: #{tpu_custom_call.1} parent=5 // pred_check_branch
        %246 = sbr.rel (%p243) target = $region40
      $region39: #{tpu_custom_call.1} parent=5 // pred_region
        %s247 = ssub.s32 %s20, 1
        %s248 = sand.u32 %s59, 1
        %s249 = scalar_lea.sflag [#allocation3], %s248
        %s250 = sand.u32 %s59, 1
        %s251 = smul.addr %s250, 32
        %s252 = scalar_lea.vmem [#allocation2], %s251
        // Predicated region
        $region41: #{tpu_custom_call.1} parent=39 // pred_check
          %p253 = pneg %p72
        $region42: #{tpu_custom_call.1} parent=39 // pred_check_branch
          %255 = sbr.rel (%p253) target = $region44
        $region43: #{tpu_custom_call.1} parent=39 // pred_region
          %256 = dma.done %s249, 512
        $region44: #{tpu_custom_call.1} parent=39 // pred_fallthru
          _
        %s257 = sand.u32 %s85, 1
        %s258 = scalar_lea.sflag [#allocation6], %s257
        %s259 = sand.u32 %s85, 1
        %s260 = smul.addr %s259, 32
        %s261 = scalar_lea.vmem [#allocation5], %s260
        // Predicated region
        $region45: #{tpu_custom_call.1} parent=39 // pred_check
          %p262 = pneg %p98
        $region46: #{tpu_custom_call.1} parent=39 // pred_check_branch
          %264 = sbr.rel (%p262) target = $region48
        $region47: #{tpu_custom_call.1} parent=39 // pred_region
          %265 = dma.done %s258, 512
        $region48: #{tpu_custom_call.1} parent=39 // pred_fallthru
          _
        %p266 = scmp.lt.s32.totalorder %s25, 1
        %s267 = scalar_select %p266, %s25, 1
        %s268 = smul.addr %s267, 4
        %s269 = smul.addr %s268, 8
        %s270 = scalar_lea.vmem %s0, %s269
        %p271 = pneg %p46
        %p272 = pneg %p43
        %s273 = sand.u32 %s59, 1
        %s274 = scalar_lea.sflag [#allocation3], %s273
        %s275 = sand.u32 %s59, 1
        %s276 = smul.addr %s275, 32
        %s277 = scalar_lea.vmem [#allocation2], %s276
        %p278 = pneg %p72
        %p279 = pneg %p69
        %s280 = sand.u32 %s85, 1
        %s281 = scalar_lea.sflag [#allocation6], %s280
        %s282 = sand.u32 %s85, 1
        %s283 = smul.addr %s282, 32
        %s284 = scalar_lea.vmem [#allocation5], %s283
        %p285 = pneg %p98
        %p286 = pneg %p95
        %p287 = pneg %p119
        %p288 = pneg %p116
        %p289 = pneg %p140
        %p290 = pneg %p137
        %p291 = pneg %p166
        %p292 = pneg %p163
        %s293 = sand.u32 %s153, 1
        %s294 = scalar_lea.sflag [#allocation4], %s293
        %s295 = sand.u32 %s153, 1
        %s296 = smul.addr %s295, 32
        %s297 = scalar_lea.vmem [#allocation7], %s296
        %p298 = scmp.lt.s32.totalorder %s25, 1
        %s299 = scalar_select %p298, %s25, 1
        %s300 = smul.addr %s299, 4
        %s301 = smul.addr %s300, 8
        %s302 = scalar_lea.vmem %s0, %s301
        %v303 = vld [vmem:[%s302] sm:$0xff]
        %v304 = vld [vmem:[%s302 + $0x8] sm:$0xff]
        %v305 = vld [vmem:[%s302 + $0x10] sm:$0xff]
        %v306 = vld [vmem:[%s302 + $0x18] sm:$0xff]
        %v307 = vadd.f32 %v303, %v304
        %308 = vadd.xlane.f32.xlu0 %v307
        %v309 = vpop.xlane.xlu0 %308
        %v310 = vadd.f32 %v305, %v306
        %311 = vadd.xlane.f32.xlu0 %v310
        %v312 = vpop.xlane.xlu0 %311
        %v313 = vld [vmem:[%s252] sm:$0xff]
        %v314 = vld [vmem:[%s252 + $0x8] sm:$0xff]
        %v315 = vld [vmem:[%s252 + $0x10] sm:$0xff]
        %v316 = vld [vmem:[%s252 + $0x18] sm:$0xff]
        %v317 = vadd.f32 %v313, %v314
        %318 = vadd.xlane.f32.xlu0 %v317
        %v319 = vpop.xlane.xlu0 %318
        %v320 = vadd.f32 %v315, %v316
        %321 = vadd.xlane.f32.xlu0 %v320
        %v322 = vpop.xlane.xlu0 %321
        %v323 = vadd.f32 %v309, %v319
        %v324 = vadd.f32 %v312, %v322
        %v325 = vld [vmem:[%s261] sm:$0xff]
        %v326 = vld [vmem:[%s261 + $0x8] sm:$0xff]
        %v327 = vld [vmem:[%s261 + $0x10] sm:$0xff]
        %v328 = vld [vmem:[%s261 + $0x18] sm:$0xff]
        %v329 = vadd.f32 %v325, %v326
        %330 = vadd.xlane.f32.xlu0 %v329
        %v331 = vpop.xlane.xlu0 %330
        %v332 = vadd.f32 %v327, %v328
        %333 = vadd.xlane.f32.xlu0 %v332
        %v334 = vpop.xlane.xlu0 %333
        %v335 = vadd.f32 %v323, %v331
        %v336 = vadd.f32 %v324, %v334
        %v337 = vmul.f32 %v335, 0.00390625
        %v338 = vmul.f32 %v336, 0.00390625
        %v339 = vld [vmem:[%s3] sm:$0xff]
        %v340 = vld [vmem:[%s3 + $0x8] sm:$0xff]
        %v341 = vmul.f32 %v339, %v337
        %v342 = vmul.f32 %v340, %v338
        %vm343 = vcmask 31744
        %v344 = vsel %vm343, %v341, 0.0
        %v345 = vsel %vm343, %v342, 0.0
        %v346 = vadd.f32 %v344, %v345
        %v347 = vrot.slane %v346, 4
        %v348 = vadd.f32 %v346, %v347
        %v349 = vrot.slane %v348, 2
        %v350 = vadd.f32 %v348, %v349
        %v351 = vrot.slane %v350, 1
        %v352 = vadd.f32 %v350, %v351
        %vm353 = vcmp.ge.f32.partialorder %v352, 0.0
        %v354 = vmul.f32 %v352, 0.2
        %v355 = vsel %vm353, %v352, %v354
        %v356 = vld [vmem:[%s4] sm:$0xff]
        %v357 = vld [vmem:[%s4 + $0x8] sm:$0xff]
        %v358 = vld [vmem:[%s4 + $0x10] sm:$0xff]
        %v359 = vld [vmem:[%s4 + $0x18] sm:$0xff]
        %v360 = vld [vmem:[%s4 + $0x20] sm:$0xff]
        %v361 = vld [vmem:[%s4 + $0x28] sm:$0xff]
        %v362 = vmul.f32 %v356, %v355
        %v363 = vmul.f32 %v357, %v355
        %v364 = vmul.f32 %v358, %v355
        %v365 = vmul.f32 %v359, %v355
        %v366 = vmul.f32 %v360, %v355
        %v367 = vmul.f32 %v361, %v355
        %v368 = vsel %vm343, %v362, 0.0
        %369 = vadd.xlane.f32.xlu0 %v368
        %v370 = vpop.xlane.xlu0 %369
        %v371 = vsel %vm343, %v363, 0.0
        %372 = vadd.xlane.f32.xlu0 %v371
        %v373 = vpop.xlane.xlu0 %372
        %v374 = vsel %vm343, %v364, 0.0
        %375 = vadd.xlane.f32.xlu0 %v374
        %v376 = vpop.xlane.xlu0 %375
        %v377 = vsel %vm343, %v365, 0.0
        %378 = vadd.xlane.f32.xlu0 %v377
        %v379 = vpop.xlane.xlu0 %378
        %v380 = vsel %vm343, %v366, 0.0
        %381 = vadd.xlane.f32.xlu0 %v380
        %v382 = vpop.xlane.xlu0 %381
        %v383 = vsel %vm343, %v367, 0.0
        %384 = vadd.xlane.f32.xlu0 %v383
        %v385 = vpop.xlane.xlu0 %384
        %v386 = vmax.f32 %v370, %v376
        %v387 = vmax.f32 %v373, %v379
        %v388 = vmax.f32 %v386, %v382
        %v389 = vmax.f32 %v387, %v385
        %v390 = vsub.f32 %v370, %v388
        %v391 = vsub.f32 %v373, %v389
        %v392 = vmul.f32 %v390, 1.442695
        %v393 = vpow.pop %v392
        %v394 = vmul.f32 %v391, 1.442695
        %v395 = vpow.pop %v394
        %v396 = vsub.f32 %v376, %v388
        %v397 = vsub.f32 %v379, %v389
        %v398 = vmul.f32 %v396, 1.442695
        %v399 = vpow.pop %v398
        %v400 = vmul.f32 %v397, 1.442695
        %v401 = vpow.pop %v400
        %v402 = vsub.f32 %v382, %v388
        %v403 = vsub.f32 %v385, %v389
        %v404 = vmul.f32 %v402, 1.442695
        %v405 = vpow.pop %v404
        %v406 = vmul.f32 %v403, 1.442695
        %v407 = vpow.pop %v406
        %v408 = vadd.f32 %v393, %v399
        %v409 = vadd.f32 %v395, %v401
        %v410 = vadd.f32 %v408, %v405
        %v411 = vadd.f32 %v409, %v407
        %v412 = vrcp.pop %v410
        %v413 = vrcp.pop %v411
        %v414 = vmul.f32 %v393, %v412
        %v415 = vmul.f32 %v395, %v413
        %v416 = vmul.f32 %v303, %v414
        %v417 = vmul.f32 %v304, %v414
        %v418 = vmul.f32 %v305, %v415
        %v419 = vmul.f32 %v306, %v415
        %v420 = vmul.f32 %v399, %v412
        %v421 = vmul.f32 %v401, %v413
        %v422 = vmul.f32 %v313, %v420
        %v423 = vmul.f32 %v314, %v420
        %v424 = vmul.f32 %v315, %v421
        %v425 = vmul.f32 %v316, %v421
        %v426 = vadd.f32 %v416, %v422
        %v427 = vadd.f32 %v417, %v423
        %v428 = vadd.f32 %v418, %v424
        %v429 = vadd.f32 %v419, %v425
        %v430 = vmul.f32 %v405, %v412
        %v431 = vmul.f32 %v407, %v413
        %v432 = vmul.f32 %v325, %v430
        %v433 = vmul.f32 %v326, %v430
        %v434 = vmul.f32 %v327, %v431
        %v435 = vmul.f32 %v328, %v431
        %v436 = vadd.f32 %v426, %v432
        %v437 = vadd.f32 %v427, %v433
        %v438 = vadd.f32 %v428, %v434
        %v439 = vadd.f32 %v429, %v435
        %440 = vst [vmem:[%s297] sm:$0xff] %v436
        %441 = vst [vmem:[%s297 + $0x8] sm:$0xff] %v437
        %442 = vst [vmem:[%s297 + $0x10] sm:$0xff] %v438
        %443 = vst [vmem:[%s297 + $0x18] sm:$0xff] %v439
        %s444 = sand.u32 %s153, 1
        %s445 = scalar_lea.sflag [#allocation4], %s444
        %s446 = sand.u32 %s153, 1
        %s447 = smul.addr %s446, 32
        %s448 = scalar_lea.vmem [#allocation7], %s447
        // Predicated region
        $region49: #{tpu_custom_call.1} parent=39 // pred_check
          %p449 = pneg %p163
        $region50: #{tpu_custom_call.1} parent=39 // pred_check_branch
          %451 = sbr.rel (%p449) target = $region52
        $region51: #{tpu_custom_call.1} parent=39 // pred_region
          %s453 = ssub.s32 512, 512
          %454 = vsyncadd %s445, %s453
          %s455 = smul.addr %s25, 4
          %s456 = smul.addr %s455, 128
          %s457 = scalar_lea.hbm %s5, %s456
          %s458 = sshll.u32 %s448, 4
          %s459 = int_to_ptr.vmem [resolvable:$true] %s458
          %464 = dma.vmem_to_hbm [thread:$0]  %s459, 512, %s457, %s445, 256, 256, 16
        $region52: #{tpu_custom_call.1} parent=39 // pred_fallthru
          _
      $region40: #{tpu_custom_call.1} parent=5 // pred_fallthru
        _
      %p465 = scmp.le.s32.totalorder 2, %s20
      // Predicated region
      $region53: #{tpu_custom_call.1} parent=5 // pred_check
        %p466 = pneg %p465
      $region54: #{tpu_custom_call.1} parent=5 // pred_check_branch
        %468 = sbr.rel (%p466) target = $region56
      $region55: #{tpu_custom_call.1} parent=5 // pred_region
        %s469 = ssub.s32 %s20, 2
        // Predicated region
        $region57: #{tpu_custom_call.1} parent=55 // pred_check
          %p470 = pneg %p169
        $region58: #{tpu_custom_call.1} parent=55 // pred_check_branch
          %472 = sbr.rel (%p470) target = $region60
        $region59: #{tpu_custom_call.1} parent=55 // pred_region
          %s473 = sand.u32 %s154, 1
          %s474 = scalar_lea.sflag [#allocation4], %s473
          %s475 = sand.u32 %s154, 1
          %s476 = smul.addr %s475, 32
          %s477 = scalar_lea.vmem [#allocation7], %s476
          %478 = dma.done %s474, 512
        $region60: #{tpu_custom_call.1} parent=55 // pred_fallthru
          _
      $region56: #{tpu_custom_call.1} parent=5 // pred_fallthru
        _
    $region6: #{tpu_custom_call.1} parent=1 // loop_footer
      %s24 = sadd.s32 1, %s20
    $region7: #{tpu_custom_call.1} parent=1 // loop_footer_branch
      %19 = sbr.rel target = $region3
    $region8: #{tpu_custom_call.1} parent=1 // loop_exit
      _
    %479 = vsyncpa [#allocation3], 1
    %s480 = scalar_lea.sflag [#allocation3], 1
    %481 = vsyncpa %s480, 1
    %482 = vsyncpa [#allocation6], 1
    %s483 = scalar_lea.sflag [#allocation6], 1
    %484 = vsyncpa %s483, 1
    %485 = vsyncpa [#allocation4], 1
    %s486 = scalar_lea.sflag [#allocation4], 1
    %487 = vsyncpa %s486, 1

</llo_original>
